<compile_context>
chip_gen: v7x
topology: tpu7x:2x2x1
jax: 0.10.0
libtpu: 0.0.40
codegen_flags: <defaults>
</compile_context>

<pallas_src>
import jax
import jax.numpy as jnp
from jax import lax
from jax.experimental import pallas as pl
from jax.experimental.pallas import tpu as pltpu


# --------------------------------------------------------------------------
# Fused Pallas kernel: base linear -> dropout -> classifier linear
# --------------------------------------------------------------------------
def _fused_classifier_kernel(x_ref, wb_ref, bb_ref, mask_ref, wc_ref, bc_ref,
                             o_ref, acc_ref):
    k = pl.program_id(0)

    @pl.when(k == 0)
    def _():
        acc_ref[...] = jnp.zeros(acc_ref.shape, acc_ref.dtype)

    # Partial base matmul on this K tile: contract K of x [M, tk] against
    # K of base_w [F, tk]  ->  [M, F] f32 accumulator (no weight transpose).
    acc_ref[...] += lax.dot_general(
        x_ref[...], wb_ref[...],
        dimension_numbers=(((1,), (1,)), ((), ())),
        preferred_element_type=jnp.float32)

    @pl.when(k == pl.num_programs(0) - 1)
    def _():
        # Epilogue: bias, dropout mask (0 or 1/(1-p)), classifier matmul+bias.
        feats = (acc_ref[...] + bb_ref[...]) * mask_ref[...]
        logits = lax.dot_general(
            feats.astype(wc_ref.dtype), wc_ref[...],
            dimension_numbers=(((1,), (1,)), ((), ())),
            preferred_element_type=jnp.float32) + bc_ref[...]
        o_ref[...] = logits.astype(o_ref.dtype)


def fused_classifier(x_flat, base_w, base_b, mask, cls_w, cls_b, *, tk=512):
    """x_flat: [M, K], base_w: [F, K], base_b: [F], mask: [M, F] (0 or 2),
    cls_w: [N, F], cls_b: [N]  ->  [M, N]."""
    M, K = x_flat.shape
    F = base_w.shape[0]
    N = cls_w.shape[0]
    if K % tk != 0:            # keep blocks exact at toy shapes
        tk = K
    grid = (K // tk,)

    return pl.pallas_call(
        _fused_classifier_kernel,
        out_shape=jax.ShapeDtypeStruct((M, N), x_flat.dtype),
        grid_spec=pltpu.PrefetchScalarGridSpec(
            num_scalar_prefetch=0,
            grid=grid,
            in_specs=[
                pl.BlockSpec((M, tk), lambda k: (0, k)),   # x tile
                pl.BlockSpec((F, tk), lambda k: (0, k)),   # base_w tile
                pl.BlockSpec((1, F), lambda k: (0, 0)),    # base bias
                pl.BlockSpec((M, F), lambda k: (0, 0)),    # dropout mask
                pl.BlockSpec((N, F), lambda k: (0, 0)),    # sampled cls_w
                pl.BlockSpec((1, N), lambda k: (0, 0)),    # sampled cls_b
            ],
            out_specs=pl.BlockSpec((M, N), lambda k: (0, 0)),
            scratch_shapes=[pltpu.VMEM((M, F), jnp.float32)],
        ),
        compiler_params=pltpu.CompilerParams(
            # K is a reduction axis feeding a resident accumulator.
            dimension_semantics=("arbitrary",),
            # Budget well under v7x's 64 MiB physical VMEM.
            vmem_limit_bytes=32 * 1024 * 1024,
        ),
    )(x_flat, base_w, base_b.reshape(1, F), mask, cls_w, cls_b.reshape(1, N))


# --------------------------------------------------------------------------
# HFClassifier forward (glue in plain JAX, hot path in one Pallas call)
# --------------------------------------------------------------------------
def hf_classifier_forward(x_nchw, labels, params, *, sampler_num,
                          dropout_rng=None, training=True):
    B = x_nchw.shape[0]
    x_flat = x_nchw.reshape(B, -1)
    F = params["base_w"].shape[0]

    # nn.Dropout(p=0.5): identity in eval mode; scaled keep-mask in training.
    if training:
        keep = jax.random.bernoulli(dropout_rng, 0.5, (B, F))
        mask = keep.astype(x_flat.dtype) * 2.0        # 1 / (1 - p)
    else:
        mask = jnp.ones((B, F), x_flat.dtype)

    # TODO(synk): real HFSampler would gather arbitrary class rows; use
    # PrefetchScalarGridSpec-driven row DMA in-kernel for that case.
    w = params["cls_w"][:sampler_num]                 # [sampler_num, F] (slice)
    b = params["cls_b"][:sampler_num]                 # [sampler_num]
    labels = lax.stop_gradient(labels)                # labels.detach()

    logits = fused_classifier(x_flat, params["base_w"], params["base_b"],
                              mask, w, b)
    return logits, labels


# --------------------------------------------------------------------------
# Main
# --------------------------------------------------------------------------
if __name__ == "__main__":
    B, C, H, W = 8, 4, 16, 16
    feature_dim = 128
    sampler_num = 128
    num_classes = 256

    key = jax.random.PRNGKey(0)
    k_x, k_bw, k_bb, k_cw, k_cb, k_lab, k_drop = jax.random.split(key, 7)

    x = jax.random.normal(k_x, (B, C, H, W), dtype=jnp.float32)
    labels = jax.random.randint(k_lab, (B,), 0, sampler_num, dtype=jnp.int32)

    params = {
        "base_w": jax.random.normal(k_bw, (feature_dim, C * H * W),
                                    dtype=jnp.float32) * 0.02,
        "base_b": jax.random.normal(k_bb, (feature_dim,),
                                    dtype=jnp.float32) * 0.02,
        "cls_w": jax.random.normal(k_cw, (num_classes, feature_dim),
                                   dtype=jnp.float32) * 0.02,
        "cls_b": jax.random.normal(k_cb, (num_classes,),
                                   dtype=jnp.float32) * 0.02,
    }

    logits, out_labels = hf_classifier_forward(
        x, labels, params, sampler_num=sampler_num,
        dropout_rng=k_drop, training=True)
    jax.block_until_ready((logits, out_labels))

    assert logits.shape == (B, sampler_num)
    assert out_labels.shape == (B,)

    # Pure-JAX reference (same dropout mask) for a correctness sanity check.
    x_flat = x.reshape(B, -1)
    mask = jax.random.bernoulli(k_drop, 0.5, (B, feature_dim)).astype(
        jnp.float32) * 2.0
    feats_ref = (x_flat @ params["base_w"].T + params["base_b"]) * mask
    logits_ref = feats_ref @ params["cls_w"][:sampler_num].T \
        + params["cls_b"][:sampler_num]
    assert jnp.allclose(logits, logits_ref, rtol=1e-3, atol=1e-3), (
        float(jnp.max(jnp.abs(logits - logits_ref))))

    print("KERNEL_OK")
</pallas_src>

<mosaic_0001>
module attributes {stable_mosaic.version = 11 : i64} {
  func.func @_fused_classifier_kernel(%arg0: i32, %arg1: memref<8x512xf32, #tpu.memory_space<vmem>>, %arg2: memref<128x512xf32, #tpu.memory_space<vmem>>, %arg3: memref<1x128xf32, #tpu.memory_space<vmem>>, %arg4: memref<8x128xf32, #tpu.memory_space<vmem>>, %arg5: memref<128x128xf32, #tpu.memory_space<vmem>>, %arg6: memref<1x128xf32, #tpu.memory_space<vmem>>, %arg7: memref<8x128xf32, #tpu.memory_space<vmem>>, %arg8: memref<8x128xf32, #tpu.memory_space<vmem>>) attributes {dimension_semantics = [#tpu.dimension_semantics<arbitrary>], iteration_bounds = array<i64: 2>, scalar_prefetch = 0 : i64, scratch_operands = 1 : i64, tpu.core_type = #tpu.core_type<tc>, window_params = [{transform_indices = @transform_0, window_bounds = array<i64: 8, 512>}, {transform_indices = @transform_1, window_bounds = array<i64: 128, 512>}, {pipeline_mode = #tpu.pipeline_mode<synchronous>, transform_indices = @transform_2, window_bounds = array<i64: 1, 128>}, {pipeline_mode = #tpu.pipeline_mode<synchronous>, transform_indices = @transform_3, window_bounds = array<i64: 8, 128>}, {pipeline_mode = #tpu.pipeline_mode<synchronous>, transform_indices = @transform_4, window_bounds = array<i64: 128, 128>}, {pipeline_mode = #tpu.pipeline_mode<synchronous>, transform_indices = @transform_5, window_bounds = array<i64: 1, 128>}, {pipeline_mode = #tpu.pipeline_mode<synchronous>, transform_indices = @transform_6, window_bounds = array<i64: 8, 128>}]} {
    %c0_i32 = arith.constant 0 : i32
    %0 = arith.cmpi eq, %arg0, %c0_i32 : i32
    %1 = arith.extui %0 : i1 to i32
    %c0_i32_0 = arith.constant 0 : i32
    %2 = arith.cmpi ne, %1, %c0_i32_0 : i32
    scf.if %2 {
      %cst_9 = arith.constant 0.000000e+00 : f32
      %12 = vector.broadcast %cst_9 : f32 to vector<8x128xf32>
      %c0_10 = arith.constant 0 : index
      %c0_11 = arith.constant 0 : index
      %13 = vector.load %arg8[%c0_10, %c0_11] : memref<8x128xf32, #tpu.memory_space<vmem>>, vector<8x128xf32>
      tpu.vector_store %arg8[%c0_10, %c0_11], %12 {strides = array<i32>} : memref<8x128xf32, #tpu.memory_space<vmem>>, vector<8x128xf32>,
    } else {
    }
    %c0 = arith.constant 0 : index
    %c0_1 = arith.constant 0 : index
    %3 = vector.load %arg8[%c0, %c0_1] : memref<8x128xf32, #tpu.memory_space<vmem>>, vector<8x128xf32>
    %c0_2 = arith.constant 0 : index
    %c0_3 = arith.constant 0 : index
    %4 = vector.load %arg1[%c0_2, %c0_3] : memref<8x512xf32, #tpu.memory_space<vmem>>, vector<8x512xf32>
    %c0_4 = arith.constant 0 : index
    %c0_5 = arith.constant 0 : index
    %5 = vector.load %arg2[%c0_4, %c0_5] : memref<128x512xf32, #tpu.memory_space<vmem>>, vector<128x512xf32>
    %cst = arith.constant dense<0.000000e+00> : vector<8x128xf32>
    %6 = tpu.matmul %4, %5, %cst {dimension_numbers = #tpu.dot_dimension_numbers<[1], [1], [0], [0], [0, 0, 1, 0], [], []>} : vector<8x512xf32>, vector<128x512xf32>, vector<8x128xf32> -> vector<8x128xf32>
    %7 = arith.addf %3, %6 : vector<8x128xf32>
    %c0_6 = arith.constant 0 : index
    %c0_7 = arith.constant 0 : index
    %8 = vector.load %arg8[%c0_6, %c0_7] : memref<8x128xf32, #tpu.memory_space<vmem>>, vector<8x128xf32>
    tpu.vector_store %arg8[%c0_6, %c0_7], %7 {strides = array<i32>} : memref<8x128xf32, #tpu.memory_space<vmem>>, vector<8x128xf32>,
    %c1_i32 = arith.constant 1 : i32
    %9 = arith.cmpi eq, %arg0, %c1_i32 : i32
    %10 = arith.extui %9 : i1 to i32
    %c0_i32_8 = arith.constant 0 : i32
    %11 = arith.cmpi ne, %10, %c0_i32_8 : i32
    scf.if %11 {
      %c0_9 = arith.constant 0 : index
      %c0_10 = arith.constant 0 : index
      %12 = vector.load %arg8[%c0_9, %c0_10] : memref<8x128xf32, #tpu.memory_space<vmem>>, vector<8x128xf32>
      %c0_11 = arith.constant 0 : index
      %c0_12 = arith.constant 0 : index
      %13 = vector.load %arg3[%c0_11, %c0_12] : memref<1x128xf32, #tpu.memory_space<vmem>>, vector<1x128xf32>
      %14 = vector.broadcast %13 : vector<1x128xf32> to vector<8x128xf32>
      %15 = arith.addf %12, %14 : vector<8x128xf32>
      %c0_13 = arith.constant 0 : index
      %c0_14 = arith.constant 0 : index
      %16 = vector.load %arg4[%c0_13, %c0_14] : memref<8x128xf32, #tpu.memory_space<vmem>>, vector<8x128xf32>
      %17 = arith.mulf %15, %16 : vector<8x128xf32>
      %c0_15 = arith.constant 0 : index
      %c0_16 = arith.constant 0 : index
      %18 = vector.load %arg5[%c0_15, %c0_16] : memref<128x128xf32, #tpu.memory_space<vmem>>, vector<128x128xf32>
      %cst_17 = arith.constant dense<0.000000e+00> : vector<8x128xf32>
      %19 = tpu.matmul %17, %18, %cst_17 {dimension_numbers = #tpu.dot_dimension_numbers<[1], [1], [0], [0], [0, 0, 1, 0], [], []>} : vector<8x128xf32>, vector<128x128xf32>, vector<8x128xf32> -> vector<8x128xf32>
      %c0_18 = arith.constant 0 : index
      %c0_19 = arith.constant 0 : index
      %20 = vector.load %arg6[%c0_18, %c0_19] : memref<1x128xf32, #tpu.memory_space<vmem>>, vector<1x128xf32>
      %21 = vector.broadcast %20 : vector<1x128xf32> to vector<8x128xf32>
      %22 = arith.addf %19, %21 : vector<8x128xf32>
      %c0_20 = arith.constant 0 : index
      %c0_21 = arith.constant 0 : index
      %23 = vector.load %arg7[%c0_20, %c0_21] : memref<8x128xf32, #tpu.memory_space<vmem>>, vector<8x128xf32>
      tpu.vector_store %arg7[%c0_20, %c0_21], %22 {strides = array<i32>} : memref<8x128xf32, #tpu.memory_space<vmem>>, vector<8x128xf32>,
    } else {
    }
    return
  }
  func.func @transform_0(%arg0: i32) -> (i32, i32) {
    %c0_i32 = arith.constant 0 : i32
    %c0_i32_0 = arith.constant 0 : i32
    return %c0_i32, %arg0 : i32, i32
  }
  func.func @transform_1(%arg0: i32) -> (i32, i32) {
    %c0_i32 = arith.constant 0 : i32
    %c0_i32_0 = arith.constant 0 : i32
    return %c0_i32, %arg0 : i32, i32
  }
  func.func @transform_2(%arg0: i32) -> (i32, i32) {
    %c0_i32 = arith.constant 0 : i32
    %c0_i32_0 = arith.constant 0 : i32
    %c0_i32_1 = arith.constant 0 : i32
    return %c0_i32, %c0_i32_0 : i32, i32
  }
  func.func @transform_3(%arg0: i32) -> (i32, i32) {
    %c0_i32 = arith.constant 0 : i32
    %c0_i32_0 = arith.constant 0 : i32
    %c0_i32_1 = arith.constant 0 : i32
    return %c0_i32, %c0_i32_0 : i32, i32
  }
  func.func @transform_4(%arg0: i32) -> (i32, i32) {
    %c0_i32 = arith.constant 0 : i32
    %c0_i32_0 = arith.constant 0 : i32
    %c0_i32_1 = arith.constant 0 : i32
    return %c0_i32, %c0_i32_0 : i32, i32
  }
  func.func @transform_5(%arg0: i32) -> (i32, i32) {
    %c0_i32 = arith.constant 0 : i32
    %c0_i32_0 = arith.constant 0 : i32
    %c0_i32_1 = arith.constant 0 : i32
    return %c0_i32, %c0_i32_0 : i32, i32
  }
  func.func @transform_6(%arg0: i32) -> (i32, i32) {
    %c0_i32 = arith.constant 0 : i32
    %c0_i32_0 = arith.constant 0 : i32
    %c0_i32_1 = arith.constant 0 : i32
    return %c0_i32, %c0_i32_0 : i32, i32
  }
}

</mosaic_0001>

<llo_original>
// kernel: tpu_custom_call.1
$region0: #{tpu_custom_call.1}
  #allocation0 [shape = 'u32[]', space=smem, size = 0x4, offset = 0x4, fixed_abs, tag = 'smem constant byte address 0x4 - core index']
  #allocation1 [shape = 'u32[144,128]{1,0:T(1,128)}', space=vmem, size = 0x12000, scoped, tag = 'internal scratch']
  #allocation2 [shape = 'f32[8,128]{1,0:T(8,128)}', space=vmem, size = 0x1000, scoped, tag = 'scratch operand']
  %s0 = inlined_call_operand.hbm [shape: f32[8,1024], index: 0, kind: input, shape index: {}]
  %s1 = inlined_call_operand.hbm [shape: f32[128,1024], index: 1, kind: input, shape index: {}]
  %s2 = inlined_call_operand.vmem [shape: f32[1,128], index: 2, kind: input, shape index: {}]
  %s3 = inlined_call_operand.vmem [shape: f32[8,128], index: 3, kind: input, shape index: {}]
  %s4 = inlined_call_operand.hbm [shape: f32[128,128], index: 4, kind: input, shape index: {}]
  %s5 = inlined_call_operand.vmem [shape: f32[1,128], index: 5, kind: input, shape index: {}]
  %s6 = inlined_call_operand.hbm [shape: f32[8,128], index: 6, kind: output, shape index: {}]
  %s7 = sld [smem:[#allocation0]]
  $region77: #{tpu_custom_call.1} parent=0
    _
  %s9 = ssub.s32 1, %s7
  %s10 = scalar_select 0, %s9, %s7
  $region1: #{tpu_custom_call.1} parent=0
    #allocation3 [shape = 'u8[32768]{0}', space=vmem, size = 0x8000, scoped, tag = 'input window, operand 0']
    #allocation4 [shape = 's32[2]{0}', space=sflag, size = 0x8, scoped, tag = 'scoped memory for tpu_custom_call.1']
    #allocation5 [shape = 's32[2]{0}', space=sflag, size = 0x8, scoped, tag = 'scoped memory for tpu_custom_call.1']
    #allocation6 [shape = 'u8[524288]{0}', space=vmem, size = 0x80000, scoped, tag = 'input window, operand 1']
    #allocation7 [shape = 's32[2]{0}', space=sflag, size = 0x8, scoped, tag = 'scoped memory for tpu_custom_call.1']
    #allocation8 [shape = 'u8[65536]{0}', space=vmem, size = 0x10000, scoped, tag = 'input window, operand 4, single buffered']
    #allocation9 [shape = 'u8[4096]{0}', space=vmem, size = 0x1000, scoped, tag = 'output window, operand 0, single buffered']
    %11 = vsyncpa [#allocation4], 0
    %s12 = scalar_lea.sflag [#allocation4], 1
    %13 = vsyncpa %s12, 0
    %14 = vsyncpa [#allocation7], 0
    %s15 = scalar_lea.sflag [#allocation7], 1
    %16 = vsyncpa %s15, 0
    %17 = vsyncpa [#allocation5], 0
    loop: start=0, step=1, limit=4
    $region2: #{tpu_custom_call.1} parent=1 // loop_pre_header
      _
    $region3: #{tpu_custom_call.1} parent=1 // loop_header
      %s19 = sphi 0, %s23
      %p20 = scmp.ge.s32.totalorder %s19, 4
      %s29 = sphi 0, %s31
      %s32 = sphi 0, %s29
      %s33 = sphi 0, %s32
      %s49 = sphi 0, %s33
      %s55 = sphi 0, %s57
      %s58 = sphi 0, %s55
      %s59 = sphi 0, %s58
      %s75 = sphi 0, %s59
      %s79 = sphi 0, %s79
      %s81 = sphi 0, %s79
      %s82 = sphi 0, %s81
      %s96 = sphi 0, %s82
      %s100 = sphi 0, %s100
      %s102 = sphi 0, %s100
      %s103 = sphi 0, %s102
      %s117 = sphi 0, %s103
      %s121 = sphi 0, %s121
      %s123 = sphi 0, %s121
      %s124 = sphi 0, %s123
      %s138 = sphi 0, %s124
      %s142 = sphi 0, %s142
      %s144 = sphi 0, %s142
      %s145 = sphi 0, %s144
      %s159 = sphi 0, %s145
      %s163 = sphi 0, %s163
      %s165 = sphi 0, %s163
      %s166 = sphi 0, %s165
      %s180 = sphi 0, %s166
    $region4: #{tpu_custom_call.1} parent=1 // loop_header_branch
      %22 = sbr.rel (%p20) target = $region8
    $region5: #{tpu_custom_call.1} parent=1 // loop_body
      %s24 = ssub.s32 %s19, 1
      %s25 = ssub.s32 %s19, 2
      %s26 = sadd.s32 %s19, 1
      %s27 = ssub.s32 %s19, %s26
      %p28 = scmp.eq.s32.totalorder %s27, 0
      %s30 = sadd.s32 %s29, 1
      %s31 = scalar_select %p28, %s29, %s30
      %p34 = pneg %p28
      %p35 = scmp.eq.s32.totalorder %s19, 1
      %p36 = por %p34, %p35
      %p37 = scmp.ne.s32.totalorder %s29, %s32
      %p38 = scmp.eq.s32.totalorder %s19, 0
      %p39 = por %p37, %p38
      %p40 = scmp.ne.s32.totalorder %s29, %s32
      %p41 = scmp.eq.s32.totalorder %s24, 1
      %p42 = por %p40, %p41
      %p43 = scmp.ne.s32.totalorder %s32, %s33
      %p44 = scmp.eq.s32.totalorder %s24, 0
      %p45 = por %p43, %p44
      %p46 = scmp.ne.s32.totalorder %s32, %s33
      %p47 = scmp.eq.s32.totalorder %s25, 1
      %p48 = por %p46, %p47
      %p50 = scmp.ne.s32.totalorder %s33, %s49
      %p51 = scmp.eq.s32.totalorder %s25, 0
      %p52 = por %p50, %p51
      %s53 = ssub.s32 %s19, %s26
      %p54 = scmp.eq.s32.totalorder %s53, 0
      %s56 = sadd.s32 %s55, 1
      %s57 = scalar_select %p54, %s55, %s56
      %p60 = pneg %p54
      %p61 = scmp.eq.s32.totalorder %s19, 1
      %p62 = por %p60, %p61
      %p63 = scmp.ne.s32.totalorder %s55, %s58
      %p64 = scmp.eq.s32.totalorder %s19, 0
      %p65 = por %p63, %p64
      %p66 = scmp.ne.s32.totalorder %s55, %s58
      %p67 = scmp.eq.s32.totalorder %s24, 1
      %p68 = por %p66, %p67
      %p69 = scmp.ne.s32.totalorder %s58, %s59
      %p70 = scmp.eq.s32.totalorder %s24, 0
      %p71 = por %p69, %p70
      %p72 = scmp.ne.s32.totalorder %s58, %s59
      %p73 = scmp.eq.s32.totalorder %s25, 1
      %p74 = por %p72, %p73
      %p76 = scmp.ne.s32.totalorder %s59, %s75
      %p77 = scmp.eq.s32.totalorder %s25, 0
      %p78 = por %p76, %p77
      %s80 = sadd.s32 %s79, 1
      %p83 = scmp.eq.s32.totalorder %s19, 1
      %p84 = scmp.ne.s32.totalorder %s79, %s81
      %p85 = scmp.eq.s32.totalorder %s19, 0
      %p86 = por %p84, %p85
      %p87 = scmp.ne.s32.totalorder %s79, %s81
      %p88 = scmp.eq.s32.totalorder %s24, 1
      %p89 = por %p87, %p88
      %p90 = scmp.ne.s32.totalorder %s81, %s82
      %p91 = scmp.eq.s32.totalorder %s24, 0
      %p92 = por %p90, %p91
      %p93 = scmp.ne.s32.totalorder %s81, %s82
      %p94 = scmp.eq.s32.totalorder %s25, 1
      %p95 = por %p93, %p94
      %p97 = scmp.ne.s32.totalorder %s82, %s96
      %p98 = scmp.eq.s32.totalorder %s25, 0
      %p99 = por %p97, %p98
      %s101 = sadd.s32 %s100, 1
      %p104 = scmp.eq.s32.totalorder %s19, 1
      %p105 = scmp.ne.s32.totalorder %s100, %s102
      %p106 = scmp.eq.s32.totalorder %s19, 0
      %p107 = por %p105, %p106
      %p108 = scmp.ne.s32.totalorder %s100, %s102
      %p109 = scmp.eq.s32.totalorder %s24, 1
      %p110 = por %p108, %p109
      %p111 = scmp.ne.s32.totalorder %s102, %s103
      %p112 = scmp.eq.s32.totalorder %s24, 0
      %p113 = por %p111, %p112
      %p114 = scmp.ne.s32.totalorder %s102, %s103
      %p115 = scmp.eq.s32.totalorder %s25, 1
      %p116 = por %p114, %p115
      %p118 = scmp.ne.s32.totalorder %s103, %s117
      %p119 = scmp.eq.s32.totalorder %s25, 0
      %p120 = por %p118, %p119
      %s122 = sadd.s32 %s121, 1
      %p125 = scmp.eq.s32.totalorder %s19, 1
      %p126 = scmp.ne.s32.totalorder %s121, %s123
      %p127 = scmp.eq.s32.totalorder %s19, 0
      %p128 = por %p126, %p127
      %p129 = scmp.ne.s32.totalorder %s121, %s123
      %p130 = scmp.eq.s32.totalorder %s24, 1
      %p131 = por %p129, %p130
      %p132 = scmp.ne.s32.totalorder %s123, %s124
      %p133 = scmp.eq.s32.totalorder %s24, 0
      %p134 = por %p132, %p133
      %p135 = scmp.ne.s32.totalorder %s123, %s124
      %p136 = scmp.eq.s32.totalorder %s25, 1
      %p137 = por %p135, %p136
      %p139 = scmp.ne.s32.totalorder %s124, %s138
      %p140 = scmp.eq.s32.totalorder %s25, 0
      %p141 = por %p139, %p140
      %s143 = sadd.s32 %s142, 1
      %p146 = scmp.eq.s32.totalorder %s19, 1
      %p147 = scmp.ne.s32.totalorder %s142, %s144
      %p148 = scmp.eq.s32.totalorder %s19, 0
      %p149 = por %p147, %p148
      %p150 = scmp.ne.s32.totalorder %s142, %s144
      %p151 = scmp.eq.s32.totalorder %s24, 1
      %p152 = por %p150, %p151
      %p153 = scmp.ne.s32.totalorder %s144, %s145
      %p154 = scmp.eq.s32.totalorder %s24, 0
      %p155 = por %p153, %p154
      %p156 = scmp.ne.s32.totalorder %s144, %s145
      %p157 = scmp.eq.s32.totalorder %s25, 1
      %p158 = por %p156, %p157
      %p160 = scmp.ne.s32.totalorder %s145, %s159
      %p161 = scmp.eq.s32.totalorder %s25, 0
      %p162 = por %p160, %p161
      %s164 = sadd.s32 %s163, 1
      %p167 = scmp.eq.s32.totalorder %s19, 1
      %p168 = scmp.ne.s32.totalorder %s163, %s165
      %p169 = scmp.eq.s32.totalorder %s19, 0
      %p170 = por %p168, %p169
      %p171 = scmp.ne.s32.totalorder %s163, %s165
      %p172 = scmp.eq.s32.totalorder %s24, 1
      %p173 = por %p171, %p172
      %p174 = scmp.ne.s32.totalorder %s165, %s166
      %p175 = scmp.eq.s32.totalorder %s24, 0
      %p176 = por %p174, %p175
      %p177 = scmp.ne.s32.totalorder %s165, %s166
      %p178 = scmp.eq.s32.totalorder %s25, 1
      %p179 = por %p177, %p178
      %p181 = scmp.ne.s32.totalorder %s166, %s180
      %p182 = scmp.eq.s32.totalorder %s25, 0
      %p183 = por %p181, %p182
      %p184 = scmp.le.s32.totalorder 1, %s19
      %p185 = scmp.lt.s32.totalorder %s19, 3
      %p186 = pnand %p184, %p185
      %p187 = pneg %p186
      // Predicated region
      $region9: #{tpu_custom_call.1} parent=5 // pred_check
        _
      $region10: #{tpu_custom_call.1} parent=5 // pred_check_branch
        %189 = sbr.rel (%p186) target = $region12
      $region11: #{tpu_custom_call.1} parent=5 // pred_region
        %s190 = ssub.s32 %s19, 1
        // Predicated region
        $region13: #{tpu_custom_call.1} parent=11 // pred_check
          %p191 = pneg %p92
        $region14: #{tpu_custom_call.1} parent=11 // pred_check_branch
          %193 = sbr.rel (%p191) target = $region16
        $region15: #{tpu_custom_call.1} parent=11 // pred_region
          _
        $region16: #{tpu_custom_call.1} parent=11 // pred_fallthru
          _
        // Predicated region
        $region17: #{tpu_custom_call.1} parent=11 // pred_check
          %p194 = pneg %p113
        $region18: #{tpu_custom_call.1} parent=11 // pred_check_branch
          %196 = sbr.rel (%p194) target = $region20
        $region19: #{tpu_custom_call.1} parent=11 // pred_region
          _
        $region20: #{tpu_custom_call.1} parent=11 // pred_fallthru
          _
        // Predicated region
        $region21: #{tpu_custom_call.1} parent=11 // pred_check
          %p197 = pneg %p134
        $region22: #{tpu_custom_call.1} parent=11 // pred_check_branch
          %199 = sbr.rel (%p197) target = $region24
        $region23: #{tpu_custom_call.1} parent=11 // pred_region
          %s201 = ssub.s32 2048, 2048
          %202 = vsyncadd [#allocation7], %s201
          %s203 = sshll.u32 [#allocation8], 4
          %s204 = int_to_ptr.vmem [resolvable:$true] %s203
          %209 = dma.hbm_to_vmem [thread:$0]  %s4, 2048, %s204, [#allocation7], 128, 128, 8
        $region24: #{tpu_custom_call.1} parent=11 // pred_fallthru
          _
        // Predicated region
        $region25: #{tpu_custom_call.1} parent=11 // pred_check
          %p210 = pneg %p155
        $region26: #{tpu_custom_call.1} parent=11 // pred_check_branch
          %212 = sbr.rel (%p210) target = $region28
        $region27: #{tpu_custom_call.1} parent=11 // pred_region
          _
        $region28: #{tpu_custom_call.1} parent=11 // pred_fallthru
          _
      $region12: #{tpu_custom_call.1} parent=5 // pred_fallthru
        _
      %p213 = scmp.lt.s32.totalorder %s19, 2
      // Predicated region
      $region29: #{tpu_custom_call.1} parent=5 // pred_check
        %p214 = pneg %p213
      $region30: #{tpu_custom_call.1} parent=5 // pred_check_branch
        %216 = sbr.rel (%p214) target = $region32
      $region31: #{tpu_custom_call.1} parent=5 // pred_region
        // Predicated region
        $region33: #{tpu_custom_call.1} parent=31 // pred_check
          %p217 = pneg %p39
        $region34: #{tpu_custom_call.1} parent=31 // pred_check_branch
          %219 = sbr.rel (%p217) target = $region36
        $region35: #{tpu_custom_call.1} parent=31 // pred_region
          %s220 = sand.u32 %s29, 1
          %s221 = scalar_lea.sflag [#allocation4], %s220
          %s222 = sand.u32 %s29, 1
          %s223 = smul.addr %s222, 32
          %s224 = scalar_lea.vmem [#allocation3], %s223
          %s225 = smul.u32 4, %s19
          %s227 = ssub.s32 512, 512
          %228 = vsyncadd %s221, %s227
          %s229 = smul.addr %s225, 128
          %s230 = scalar_lea.hbm %s0, %s229
          %s232 = sshll.u32 %s224, 4
          %s233 = int_to_ptr.vmem [resolvable:$true] %s232
          %235 = dma.hbm_to_vmem [thread:$0]  %s230, 512, %s233, %s221
        $region36: #{tpu_custom_call.1} parent=31 // pred_fallthru
          _
        // Predicated region
        $region37: #{tpu_custom_call.1} parent=31 // pred_check
          %p236 = pneg %p65
        $region38: #{tpu_custom_call.1} parent=31 // pred_check_branch
          %238 = sbr.rel (%p236) target = $region40
        $region39: #{tpu_custom_call.1} parent=31 // pred_region
          %s239 = sand.u32 %s19, 1
          %s240 = scalar_lea.sflag [#allocation7], %s239
          %s241 = sand.u32 %s55, 1
          %s242 = smul.addr %s241, 512
          %s243 = scalar_lea.vmem [#allocation6], %s242
          %s244 = smul.u32 4, %s19
          %s246 = ssub.s32 8192, 8192
          %247 = vsyncadd %s240, %s246
          %s248 = smul.addr %s244, 128
          %s249 = scalar_lea.hbm %s1, %s248
          %s250 = sshll.u32 %s243, 4
          %s251 = int_to_ptr.vmem [resolvable:$true] %s250
          %256 = dma.hbm_to_vmem [thread:$0]  %s249, 8192, %s251, %s240, 1024, 512, 32
        $region40: #{tpu_custom_call.1} parent=31 // pred_fallthru
          _
      $region32: #{tpu_custom_call.1} parent=5 // pred_fallthru
        _
      %p257 = scmp.le.s32.totalorder 1, %s19
      %p258 = scmp.lt.s32.totalorder %s19, 3
      %p259 = pnand %p257, %p258
      %p260 = pneg %p259
      // Predicated region
      $region41: #{tpu_custom_call.1} parent=5 // pred_check
        _
      $region42: #{tpu_custom_call.1} parent=5 // pred_check_branch
        %262 = sbr.rel (%p259) target = $region44
      $region43: #{tpu_custom_call.1} parent=5 // pred_region
        %s263 = ssub.s32 %s19, 1
        %s264 = sand.u32 %s32, 1
        %s265 = scalar_lea.sflag [#allocation4], %s264
        %s266 = sand.u32 %s32, 1
        %s267 = smul.addr %s266, 32
        %s268 = scalar_lea.vmem [#allocation3], %s267
        // Predicated region
        $region45: #{tpu_custom_call.1} parent=43 // pred_check
          %p269 = pneg %p45
        $region46: #{tpu_custom_call.1} parent=43 // pred_check_branch
          %271 = sbr.rel (%p269) target = $region48
        $region47: #{tpu_custom_call.1} parent=43 // pred_region
          %272 = dma.done %s265, 512
        $region48: #{tpu_custom_call.1} parent=43 // pred_fallthru
          _
        %s273 = sand.u32 %s24, 1
        %s274 = scalar_lea.sflag [#allocation7], %s273
        %s275 = sand.u32 %s58, 1
        %s276 = smul.addr %s275, 512
        %s277 = scalar_lea.vmem [#allocation6], %s276
        // Predicated region
        $region49: #{tpu_custom_call.1} parent=43 // pred_check
          %p278 = pneg %p71
        $region50: #{tpu_custom_call.1} parent=43 // pred_check_branch
          %280 = sbr.rel (%p278) target = $region52
        $region51: #{tpu_custom_call.1} parent=43 // pred_region
          %281 = dma.done %s274, 8192
        $region52: #{tpu_custom_call.1} parent=43 // pred_fallthru
          _
        // Predicated region
        $region53: #{tpu_custom_call.1} parent=43 // pred_check
          %p282 = pneg %p134
        $region54: #{tpu_custom_call.1} parent=43 // pred_check_branch
          %284 = sbr.rel (%p282) target = $region56
        $region55: #{tpu_custom_call.1} parent=43 // pred_region
          %285 = dma.done [#allocation7], 2048
        $region56: #{tpu_custom_call.1} parent=43 // pred_fallthru
          _
        %s286 = sand.u32 %s32, 1
        %s287 = scalar_lea.sflag [#allocation4], %s286
        %s288 = sand.u32 %s32, 1
        %s289 = smul.addr %s288, 32
        %s290 = scalar_lea.vmem [#allocation3], %s289
        %p291 = pneg %p45
        %p292 = pneg %p42
        %s293 = sand.u32 %s24, 1
        %s294 = scalar_lea.sflag [#allocation7], %s293
        %s295 = sand.u32 %s58, 1
        %s296 = smul.addr %s295, 512
        %s297 = scalar_lea.vmem [#allocation6], %s296
        %p298 = pneg %p71
        %p299 = pneg %p68
        %p300 = pneg %p92
        %p301 = pneg %p89
        %p302 = pneg %p113
        %p303 = pneg %p110
        %p304 = pneg %p134
        %p305 = pneg %p131
        %p306 = pneg %p155
        %p307 = pneg %p152
        %p308 = pneg %p176
        %p309 = pneg %p173
        %s310 = smul.u32 4, %s24
        %s311 = smul.u32 4, %s24
        %p312 = scmp.eq.s32.totalorder %s24, 0
        // Predicated region
        $region57: #{tpu_custom_call.1} parent=43 // pred_check
          %p313 = pneg %p312
        $region58: #{tpu_custom_call.1} parent=43 // pred_check_branch
          %315 = sbr.rel (%p313) target = $region60
        $region59: #{tpu_custom_call.1} parent=43 // pred_region
          %316 = vst [vmem:[#allocation2] sm:$0xff] 0.0
        $region60: #{tpu_custom_call.1} parent=43 // pred_fallthru
          _
        %v317 = vld [vmem:[#allocation2] sm:$0xff]
        %v318 = vld [vmem:[%s268] sm:$0xff]
        %v319 = vld [vmem:[%s268 + $0x8] sm:$0xff]
        %v320 = vld [vmem:[%s268 + $0x10] sm:$0xff]
        %v321 = vld [vmem:[%s268 + $0x18] sm:$0xff]
        %v322 = vld [vmem:[%s277] sm:$0xff]
        %v323 = vld [vmem:[%s277 + $0x8] sm:$0xff]
        %v324 = vld [vmem:[%s277 + $0x10] sm:$0xff]
        %v325 = vld [vmem:[%s277 + $0x18] sm:$0xff]
        %v326 = vld [vmem:[%s277 + $0x20] sm:$0xff]
        %v327 = vld [vmem:[%s277 + $0x28] sm:$0xff]
        %v328 = vld [vmem:[%s277 + $0x30] sm:$0xff]
        %v329 = vld [vmem:[%s277 + $0x38] sm:$0xff]
        %v330 = vld [vmem:[%s277 + $0x40] sm:$0xff]
        %v331 = vld [vmem:[%s277 + $0x48] sm:$0xff]
        %v332 = vld [vmem:[%s277 + $0x50] sm:$0xff]
        %v333 = vld [vmem:[%s277 + $0x58] sm:$0xff]
        %v334 = vld [vmem:[%s277 + $0x60] sm:$0xff]
        %v335 = vld [vmem:[%s277 + $0x68] sm:$0xff]
        %v336 = vld [vmem:[%s277 + $0x70] sm:$0xff]
        %v337 = vld [vmem:[%s277 + $0x78] sm:$0xff]
        %v338 = vld [vmem:[%s277 + $0x80] sm:$0xff]
        %v339 = vld [vmem:[%s277 + $0x88] sm:$0xff]
        %v340 = vld [vmem:[%s277 + $0x90] sm:$0xff]
        %v341 = vld [vmem:[%s277 + $0x98] sm:$0xff]
        %v342 = vld [vmem:[%s277 + $0xa0] sm:$0xff]
        %v343 = vld [vmem:[%s277 + $0xa8] sm:$0xff]
        %v344 = vld [vmem:[%s277 + $0xb0] sm:$0xff]
        %v345 = vld [vmem:[%s277 + $0xb8] sm:$0xff]
        %v346 = vld [vmem:[%s277 + $0xc0] sm:$0xff]
        %v347 = vld [vmem:[%s277 + $0xc8] sm:$0xff]
        %v348 = vld [vmem:[%s277 + $0xd0] sm:$0xff]
        %v349 = vld [vmem:[%s277 + $0xd8] sm:$0xff]
        %v350 = vld [vmem:[%s277 + $0xe0] sm:$0xff]
        %v351 = vld [vmem:[%s277 + $0xe8] sm:$0xff]
        %v352 = vld [vmem:[%s277 + $0xf0] sm:$0xff]
        %v353 = vld [vmem:[%s277 + $0xf8] sm:$0xff]
        %v354 = vld [vmem:[%s277 + $0x100] sm:$0xff]
        %v355 = vld [vmem:[%s277 + $0x108] sm:$0xff]
        %v356 = vld [vmem:[%s277 + $0x110] sm:$0xff]
        %v357 = vld [vmem:[%s277 + $0x118] sm:$0xff]
        %v358 = vld [vmem:[%s277 + $0x120] sm:$0xff]
        %v359 = vld [vmem:[%s277 + $0x128] sm:$0xff]
        %v360 = vld [vmem:[%s277 + $0x130] sm:$0xff]
        %v361 = vld [vmem:[%s277 + $0x138] sm:$0xff]
        %v362 = vld [vmem:[%s277 + $0x140] sm:$0xff]
        %v363 = vld [vmem:[%s277 + $0x148] sm:$0xff]
        %v364 = vld [vmem:[%s277 + $0x150] sm:$0xff]
        %v365 = vld [vmem:[%s277 + $0x158] sm:$0xff]
        %v366 = vld [vmem:[%s277 + $0x160] sm:$0xff]
        %v367 = vld [vmem:[%s277 + $0x168] sm:$0xff]
        %v368 = vld [vmem:[%s277 + $0x170] sm:$0xff]
        %v369 = vld [vmem:[%s277 + $0x178] sm:$0xff]
        %v370 = vld [vmem:[%s277 + $0x180] sm:$0xff]
        %v371 = vld [vmem:[%s277 + $0x188] sm:$0xff]
        %v372 = vld [vmem:[%s277 + $0x190] sm:$0xff]
        %v373 = vld [vmem:[%s277 + $0x198] sm:$0xff]
        %v374 = vld [vmem:[%s277 + $0x1a0] sm:$0xff]
        %v375 = vld [vmem:[%s277 + $0x1a8] sm:$0xff]
        %v376 = vld [vmem:[%s277 + $0x1b0] sm:$0xff]
        %v377 = vld [vmem:[%s277 + $0x1b8] sm:$0xff]
        %v378 = vld [vmem:[%s277 + $0x1c0] sm:$0xff]
        %v379 = vld [vmem:[%s277 + $0x1c8] sm:$0xff]
        %v380 = vld [vmem:[%s277 + $0x1d0] sm:$0xff]
        %v381 = vld [vmem:[%s277 + $0x1d8] sm:$0xff]
        %v382 = vld [vmem:[%s277 + $0x1e0] sm:$0xff]
        %v383 = vld [vmem:[%s277 + $0x1e8] sm:$0xff]
        %v384 = vld [vmem:[%s277 + $0x1f0] sm:$0xff]
        %v385 = vld [vmem:[%s277 + $0x1f8] sm:$0xff]
        %386 = vmatprep.subr.mxu0 %v323
        %387 = vmatpush1.xpose.msra.mxu0 %v322
        %388 = vmatprep.subr.mxu0 %v327
        %389 = vmatpush1.xpose.msra.mxu0 %v326
        %390 = vmatprep.subr.mxu0 %v331
        %391 = vmatpush1.xpose.msra.mxu0 %v330
        %392 = vmatprep.subr.mxu0 %v335
        %393 = vmatpush1.xpose.msra.mxu0 %v334
        %394 = vmatprep.subr.mxu0 %v339
        %395 = vmatpush1.xpose.msra.mxu0 %v338
        %396 = vmatprep.subr.mxu0 %v343
        %397 = vmatpush1.xpose.msra.mxu0 %v342
        %398 = vmatprep.subr.mxu0 %v347
        %399 = vmatpush1.xpose.msra.mxu0 %v346
        %400 = vmatprep.subr.mxu0 %v351
        %401 = vmatpush1.xpose.msra.mxu0 %v350
        %402 = vmatprep.subr.mxu0 %v355
        %403 = vmatpush1.xpose.msra.mxu0 %v354
        %404 = vmatprep.subr.mxu0 %v359
        %405 = vmatpush1.xpose.msra.mxu0 %v358
        %406 = vmatprep.subr.mxu0 %v363
        %407 = vmatpush1.xpose.msra.mxu0 %v362
        %408 = vmatprep.subr.mxu0 %v367
        %409 = vmatpush1.xpose.msra.mxu0 %v366
        %410 = vmatprep.subr.mxu0 %v371
        %411 = vmatpush1.xpose.msra.mxu0 %v370
        %412 = vmatprep.subr.mxu0 %v375
        %413 = vmatpush1.xpose.msra.mxu0 %v374
        %414 = vmatprep.subr.mxu0 %v379
        %415 = vmatpush1.xpose.msra.mxu0 %v378
        %416 = vmatprep.subr.mxu0 %v383
        %417 = vmatpush1.xpose.msra.mxu0 %v382
        %418 = vmatprep.subr.mxu0 0.0
        %419 = vmatpush1.xpose.msra.mxu0 0.0
        %420 = vmatprep.subr.mxu0 0.0
        %421 = vmatpush1.xpose.msra.mxu0 0.0
        %422 = vmatprep.subr.mxu0 0.0
        %423 = vmatpush1.xpose.msra.mxu0 0.0
        %424 = vmatprep.subr.mxu0 0.0
        %425 = vmatpush1.xpose.msra.mxu0 0.0
        %426 = vmatprep.subr.mxu0 0.0
        %427 = vmatpush1.xpose.msra.mxu0 0.0
        %428 = vmatprep.subr.mxu0 0.0
        %429 = vmatpush1.xpose.msra.mxu0 0.0
        %430 = vmatprep.subr.mxu0 0.0
        %431 = vmatpush1.xpose.msra.mxu0 0.0
        %432 = vmatprep.subr.mxu0 0.0
        %433 = vmatpush1.xpose.msra.mxu0 0.0
        %434 = vmatprep.subr.mxu0 0.0
        %435 = vmatpush1.xpose.msra.mxu0 0.0
        %436 = vmatprep.subr.mxu0 0.0
        %437 = vmatpush1.xpose.msra.mxu0 0.0
        %438 = vmatprep.subr.mxu0 0.0
        %439 = vmatpush1.xpose.msra.mxu0 0.0
        %440 = vmatprep.subr.mxu0 0.0
        %441 = vmatpush1.xpose.msra.mxu0 0.0
        %442 = vmatprep.subr.mxu0 0.0
        %443 = vmatpush1.xpose.msra.mxu0 0.0
        %444 = vmatprep.subr.mxu0 0.0
        %445 = vmatpush1.xpose.msra.mxu0 0.0
        %446 = vmatprep.subr.mxu0 0.0
        %447 = vmatpush1.xpose.msra.mxu0 0.0
        %448 = vmatprep.subr.mxu0 0.0
        %449 = vmatpush1.xpose.msra.mxu0 0.0
        %450 = vmatprep.mubr.f32.mxu0 %v319
        %451 = vmatmul.mubr.f32.gmra.mrb[0].mxu0 %v318
        %v452 = vpop.f32.mrb[0].mxu0
        %v453 = vadd.f32 0.0, %v452
        %v454 = vpop.f32.mrb[0].mxu0
        %455 = vdwg.mxu0
        %456 = vmatprep.subr.mxu0 %v325
        %457 = vmatpush1.xpose.msra.mxu0 %v324
        %458 = vmatprep.subr.mxu0 %v329
        %459 = vmatpush1.xpose.msra.mxu0 %v328
        %460 = vmatprep.subr.mxu0 %v333
        %461 = vmatpush1.xpose.msra.mxu0 %v332
        %462 = vmatprep.subr.mxu0 %v337
        %463 = vmatpush1.xpose.msra.mxu0 %v336
        %464 = vmatprep.subr.mxu0 %v341
        %465 = vmatpush1.xpose.msra.mxu0 %v340
        %466 = vmatprep.subr.mxu0 %v345
        %467 = vmatpush1.xpose.msra.mxu0 %v344
        %468 = vmatprep.subr.mxu0 %v349
        %469 = vmatpush1.xpose.msra.mxu0 %v348
        %470 = vmatprep.subr.mxu0 %v353
        %471 = vmatpush1.xpose.msra.mxu0 %v352
        %472 = vmatprep.subr.mxu0 %v357
        %473 = vmatpush1.xpose.msra.mxu0 %v356
        %474 = vmatprep.subr.mxu0 %v361
        %475 = vmatpush1.xpose.msra.mxu0 %v360
        %476 = vmatprep.subr.mxu0 %v365
        %477 = vmatpush1.xpose.msra.mxu0 %v364
        %478 = vmatprep.subr.mxu0 %v369
        %479 = vmatpush1.xpose.msra.mxu0 %v368
        %480 = vmatprep.subr.mxu0 %v373
        %481 = vmatpush1.xpose.msra.mxu0 %v372
        %482 = vmatprep.subr.mxu0 %v377
        %483 = vmatpush1.xpose.msra.mxu0 %v376
        %484 = vmatprep.subr.mxu0 %v381
        %485 = vmatpush1.xpose.msra.mxu0 %v380
        %486 = vmatprep.subr.mxu0 %v385
        %487 = vmatpush1.xpose.msra.mxu0 %v384
        %488 = vmatprep.subr.mxu0 0.0
        %489 = vmatpush1.xpose.msra.mxu0 0.0
        %490 = vmatprep.subr.mxu0 0.0
        %491 = vmatpush1.xpose.msra.mxu0 0.0
        %492 = vmatprep.subr.mxu0 0.0
        %493 = vmatpush1.xpose.msra.mxu0 0.0
        %494 = vmatprep.subr.mxu0 0.0
        %495 = vmatpush1.xpose.msra.mxu0 0.0
        %496 = vmatprep.subr.mxu0 0.0
        %497 = vmatpush1.xpose.msra.mxu0 0.0
        %498 = vmatprep.subr.mxu0 0.0
        %499 = vmatpush1.xpose.msra.mxu0 0.0
        %500 = vmatprep.subr.mxu0 0.0
        %501 = vmatpush1.xpose.msra.mxu0 0.0
        %502 = vmatprep.subr.mxu0 0.0
        %503 = vmatpush1.xpose.msra.mxu0 0.0
        %504 = vmatprep.subr.mxu0 0.0
        %505 = vmatpush1.xpose.msra.mxu0 0.0
        %506 = vmatprep.subr.mxu0 0.0
        %507 = vmatpush1.xpose.msra.mxu0 0.0
        %508 = vmatprep.subr.mxu0 0.0
        %509 = vmatpush1.xpose.msra.mxu0 0.0
        %510 = vmatprep.subr.mxu0 0.0
        %511 = vmatpush1.xpose.msra.mxu0 0.0
        %512 = vmatprep.subr.mxu0 0.0
        %513 = vmatpush1.xpose.msra.mxu0 0.0
        %514 = vmatprep.subr.mxu0 0.0
        %515 = vmatpush1.xpose.msra.mxu0 0.0
        %516 = vmatprep.subr.mxu0 0.0
        %517 = vmatpush1.xpose.msra.mxu0 0.0
        %518 = vmatprep.subr.mxu0 0.0
        %519 = vmatpush1.xpose.msra.mxu0 0.0
        %520 = vmatprep.mubr.f32.mxu0 %v321
        %521 = vmatmul.mubr.f32.gmra.mrb[0].mxu0 %v320
        %v522 = vpop.f32.mrb[0].mxu0
        %v523 = vadd.f32 %v453, %v522
        %v524 = vpop.f32.mrb[0].mxu0
        %525 = vdwg.mxu0
        %v526 = vadd.f32 %v317, %v523
        %527 = vst [vmem:[#allocation2] sm:$0xff] %v526
        %p528 = scmp.eq.s32.totalorder %s24, 1
        // Predicated region
        $region61: #{tpu_custom_call.1} parent=43 // pred_check
          %p529 = pneg %p528
        $region62: #{tpu_custom_call.1} parent=43 // pred_check_branch
          %531 = sbr.rel (%p529) target = $region64
        $region63: #{tpu_custom_call.1} parent=43 // pred_region
          %v532 = vld [vmem:[#allocation2] sm:$0xff]
          %v533 = vld [vmem:[%s2] sm:$0x1]
          %v535 = vlaneseq
          %v536 = vshrl.u32 %v535, 7
          %v537 = vsub.s32 0, %v536
          %v538 = vrot.slane %v533, %v537
          %v540 = vadd.f32 %v532, %v538
          %v541 = vld [vmem:[%s3] sm:$0xff]
          %v542 = vmul.f32 %v540, %v541
          %v543 = vld [vmem:[#allocation8] sm:$0xff]
          %v544 = vld [vmem:[#allocation8 + $0x8] sm:$0xff]
          %v545 = vld [vmem:[#allocation8 + $0x10] sm:$0xff]
          %v546 = vld [vmem:[#allocation8 + $0x18] sm:$0xff]
          %v547 = vld [vmem:[#allocation8 + $0x20] sm:$0xff]
          %v548 = vld [vmem:[#allocation8 + $0x28] sm:$0xff]
          %v549 = vld [vmem:[#allocation8 + $0x30] sm:$0xff]
          %v550 = vld [vmem:[#allocation8 + $0x38] sm:$0xff]
          %v551 = vld [vmem:[#allocation8 + $0x40] sm:$0xff]
          %v552 = vld [vmem:[#allocation8 + $0x48] sm:$0xff]
          %v553 = vld [vmem:[#allocation8 + $0x50] sm:$0xff]
          %v554 = vld [vmem:[#allocation8 + $0x58] sm:$0xff]
          %v555 = vld [vmem:[#allocation8 + $0x60] sm:$0xff]
          %v556 = vld [vmem:[#allocation8 + $0x68] sm:$0xff]
          %v557 = vld [vmem:[#allocation8 + $0x70] sm:$0xff]
          %v558 = vld [vmem:[#allocation8 + $0x78] sm:$0xff]
          %v559 = vld [vmem:[%s5] sm:$0x1]
          %v561 = vlaneseq
          %v562 = vshrl.u32 %v561, 7
          %v563 = vsub.s32 0, %v562
          %v564 = vrot.slane %v559, %v563
          %566 = vmatprep.subr.mxu0 0.0
          %567 = vmatpush1.xpose.msra.mxu0 %v543
          %568 = vmatprep.subr.mxu0 0.0
          %569 = vmatpush1.xpose.msra.mxu0 %v544
          %570 = vmatprep.subr.mxu0 0.0
          %571 = vmatpush1.xpose.msra.mxu0 %v545
          %572 = vmatprep.subr.mxu0 0.0
          %573 = vmatpush1.xpose.msra.mxu0 %v546
          %574 = vmatprep.subr.mxu0 0.0
          %575 = vmatpush1.xpose.msra.mxu0 %v547
          %576 = vmatprep.subr.mxu0 0.0
          %577 = vmatpush1.xpose.msra.mxu0 %v548
          %578 = vmatprep.subr.mxu0 0.0
          %579 = vmatpush1.xpose.msra.mxu0 %v549
          %580 = vmatprep.subr.mxu0 0.0
          %581 = vmatpush1.xpose.msra.mxu0 %v550
          %582 = vmatprep.subr.mxu0 0.0
          %583 = vmatpush1.xpose.msra.mxu0 %v551
          %584 = vmatprep.subr.mxu0 0.0
          %585 = vmatpush1.xpose.msra.mxu0 %v552
          %586 = vmatprep.subr.mxu0 0.0
          %587 = vmatpush1.xpose.msra.mxu0 %v553
          %588 = vmatprep.subr.mxu0 0.0
          %589 = vmatpush1.xpose.msra.mxu0 %v554
          %590 = vmatprep.subr.mxu0 0.0
          %591 = vmatpush1.xpose.msra.mxu0 %v555
          %592 = vmatprep.subr.mxu0 0.0
          %593 = vmatpush1.xpose.msra.mxu0 %v556
          %594 = vmatprep.subr.mxu0 0.0
          %595 = vmatpush1.xpose.msra.mxu0 %v557
          %596 = vmatprep.subr.mxu0 0.0
          %597 = vmatpush1.xpose.msra.mxu0 %v558
          %598 = vmatprep.subr.mxu0 0.0
          %599 = vmatpush1.xpose.msra.mxu0 0.0
          %600 = vmatprep.subr.mxu0 0.0
          %601 = vmatpush1.xpose.msra.mxu0 0.0
          %602 = vmatprep.subr.mxu0 0.0
          %603 = vmatpush1.xpose.msra.mxu0 0.0
          %604 = vmatprep.subr.mxu0 0.0
          %605 = vmatpush1.xpose.msra.mxu0 0.0
          %606 = vmatprep.subr.mxu0 0.0
          %607 = vmatpush1.xpose.msra.mxu0 0.0
          %608 = vmatprep.subr.mxu0 0.0
          %609 = vmatpush1.xpose.msra.mxu0 0.0
          %610 = vmatprep.subr.mxu0 0.0
          %611 = vmatpush1.xpose.msra.mxu0 0.0
          %612 = vmatprep.subr.mxu0 0.0
          %613 = vmatpush1.xpose.msra.mxu0 0.0
          %614 = vmatprep.subr.mxu0 0.0
          %615 = vmatpush1.xpose.msra.mxu0 0.0
          %616 = vmatprep.subr.mxu0 0.0
          %617 = vmatpush1.xpose.msra.mxu0 0.0
          %618 = vmatprep.subr.mxu0 0.0
          %619 = vmatpush1.xpose.msra.mxu0 0.0
          %620 = vmatprep.subr.mxu0 0.0
          %621 = vmatpush1.xpose.msra.mxu0 0.0
          %622 = vmatprep.subr.mxu0 0.0
          %623 = vmatpush1.xpose.msra.mxu0 0.0
          %624 = vmatprep.subr.mxu0 0.0
          %625 = vmatpush1.xpose.msra.mxu0 0.0
          %626 = vmatprep.subr.mxu0 0.0
          %627 = vmatpush1.xpose.msra.mxu0 0.0
          %628 = vmatprep.subr.mxu0 0.0
          %629 = vmatpush1.xpose.msra.mxu0 0.0
          %630 = vmatprep.mubr.f32.mxu0 0.0
          %631 = vmatmul.mubr.f32.gmra.mrb[0].mxu0 %v542
          %v632 = vpop.f32.mrb[0].mxu0
          %v633 = vadd.f32 %v564, %v632
          %v634 = vpop.f32.mrb[0].mxu0
          %635 = vdwg.mxu0
          %636 = vst [vmem:[#allocation9] sm:$0xff] %v633
        $region64: #{tpu_custom_call.1} parent=43 // pred_fallthru
          _
        // Predicated region
        $region65: #{tpu_custom_call.1} parent=43 // pred_check
          %p637 = pneg %p173
        $region66: #{tpu_custom_call.1} parent=43 // pred_check_branch
          %639 = sbr.rel (%p637) target = $region68
        $region67: #{tpu_custom_call.1} parent=43 // pred_region
          %s641 = ssub.s32 128, 128
          %642 = vsyncadd [#allocation5], %s641
          %s644 = sshll.u32 [#allocation9], 4
          %s645 = int_to_ptr.vmem [resolvable:$true] %s644
          %647 = dma.vmem_to_hbm [thread:$0]  %s645, 128, %s6, [#allocation5]
        $region68: #{tpu_custom_call.1} parent=43 // pred_fallthru
          _
        // Predicated region
        $region69: #{tpu_custom_call.1} parent=43 // pred_check
          %p648 = pneg %p173
        $region70: #{tpu_custom_call.1} parent=43 // pred_check_branch
          %650 = sbr.rel (%p648) target = $region72
        $region71: #{tpu_custom_call.1} parent=43 // pred_region
          %651 = dma.done [#allocation5], 128
        $region72: #{tpu_custom_call.1} parent=43 // pred_fallthru
          _
      $region44: #{tpu_custom_call.1} parent=5 // pred_fallthru
        _
      %p652 = scmp.le.s32.totalorder 2, %s19
      // Predicated region
      $region73: #{tpu_custom_call.1} parent=5 // pred_check
        %p653 = pneg %p652
      $region74: #{tpu_custom_call.1} parent=5 // pred_check_branch
        %655 = sbr.rel (%p653) target = $region76
      $region75: #{tpu_custom_call.1} parent=5 // pred_region
        %s656 = ssub.s32 %s19, 2
      $region76: #{tpu_custom_call.1} parent=5 // pred_fallthru
        _
    $region6: #{tpu_custom_call.1} parent=1 // loop_footer
      %s23 = sadd.s32 1, %s19
    $region7: #{tpu_custom_call.1} parent=1 // loop_footer_branch
      %18 = sbr.rel target = $region3
    $region8: #{tpu_custom_call.1} parent=1 // loop_exit
      _
    %657 = vsyncpa [#allocation4], 1
    %s658 = scalar_lea.sflag [#allocation4], 1
    %659 = vsyncpa %s658, 1
    %660 = vsyncpa [#allocation7], 1
    %s661 = scalar_lea.sflag [#allocation7], 1
    %662 = vsyncpa %s661, 1
    %663 = vsyncpa [#allocation5], 1
    %s664 = scalar_lea.sflag [#allocation5], 1
    %665 = vsyncpa %s664, 1

</llo_original>
